<compile_context>
chip_gen: v5e
topology: v5e:2x2
jax: 0.10.0
libtpu: 0.0.40
codegen_flags: <defaults>
</compile_context>

<pallas_src>
import functools

import jax
import jax.numpy as jnp
from jax import lax
from jax.experimental import pallas as pl
from jax.experimental.pallas import tpu as pltpu


def _residual_block_kernel(stride, tile_h, Ho,
                           x_ref, w1_ref, w2_ref, wd_ref, sh1_ref, sh2_ref,
                           out_ref):
    """One (batch, output-row-band) grid step.

    x_ref  : (1, Hp, Wp*Cin)    lane-dense padded image (resident)
    w1_ref : (3, Wp*Cin, WoC)   conv1 banded weights (one slab per kernel row)
    w2_ref : (3, WoC, WoC)      conv2 banded weights
    wd_ref : (Wp*Cin, WoC)      1x1 downsample banded weights
    sh1_ref: (1, WoC)           BN1 shift, tiled over output columns
    sh2_ref: (1, WoC)           BN2 shift + conv2 bias + downsample-BN shift
    out_ref: (1, tile_h, WoC)   lane-dense output band
    (BN scales folded into the weights; WoC = Wo*Cout padded to 128 lanes.)
    """
    th2 = tile_h + 2                       # band rows incl. conv2 H-halo
    r0 = pl.program_id(1) * tile_h         # first output row of this band
    base = stride * r0                     # first padded-x row this band reads
    if (stride * tile_h) % 8 == 0:
        base = pl.multiple_of(base, 8)
    nrows = stride * (th2 - 1) + 3

    xs = x_ref[0, pl.ds(base, nrows), :]                 # (nrows, Wp*Cin)

    # ---- conv1 (+BN1 scale): one banded matmul per kernel row ---------------
    y1 = jnp.dot(xs[0:stride * (th2 - 1) + 1:stride, :], w1_ref[0],
                 preferred_element_type=jnp.float32)
    for kh in (1, 2):
        y1 = y1 + jnp.dot(xs[kh:kh + stride * (th2 - 1) + 1:stride, :],
                          w1_ref[kh], preferred_element_type=jnp.float32)
    y1 = jnp.maximum(y1 + sh1_ref[...], 0.0)             # (th2, WoC) f32

    # conv2's zero padding in H: halo rows outside [0, Ho) must be zero.
    rid = r0 - 1 + lax.broadcasted_iota(jnp.int32, (th2, 1), 0)
    y1 = jnp.where((rid >= 0) & (rid < Ho), y1, 0.0)
    y1 = y1.astype(w2_ref.dtype)

    # ---- conv2 (+BN2) + 1x1 downsample (+BNd): four banded matmuls ----------
    out = jnp.dot(xs[stride + 1:stride + 1 + stride * (tile_h - 1) + 1:stride, :],
                  wd_ref[...], preferred_element_type=jnp.float32)
    for kh in range(3):
        out = out + jnp.dot(y1[kh:kh + tile_h, :], w2_ref[kh],
                            preferred_element_type=jnp.float32)
    out = jnp.maximum(out + sh2_ref[...], 0.0)            # (tile_h, WoC) f32
    out_ref[0] = out.astype(out_ref.dtype)


def _make_banded(w_taps, scale, win, wo, s, off):
    """Block-banded GEMM weight.

    B[w_in*Ci + ci, w*Co + co] = w_taps[kw, ci, co] * scale[co]
    at w_in = s*w + kw + off; entries with w_in outside [0, win) are dropped
    (that is how zero W-padding for conv2 is realized).
    """
    kw_n, ci, co = w_taps.shape
    a = jnp.zeros((win, wo, ci, co), jnp.float32)
    w_idx = jnp.arange(wo)
    for kw in range(kw_n):
        w_in = s * w_idx + kw + off
        ok = ((w_in >= 0) & (w_in < win)).astype(jnp.float32)
        vals = (w_taps[kw] * scale[None, :])[None, :, :] * ok[:, None, None]
        a = a.at[jnp.clip(w_in, 0, win - 1), w_idx].add(vals)
    return a.transpose(0, 2, 1, 3).reshape(win * ci, wo * co)


def residual_block_forward(x_nchw, params, stride=1, eps=1e-5,
                           tile_h=None, compute_dtype=jnp.float32):
    x = jnp.transpose(x_nchw, (0, 2, 3, 1))               # NCHW -> NHWC
    N, H, W, Cin = x.shape
    Cout = params["w1"].shape[0]
    Ho = (H + 2 - 3) // stride + 1
    Wo = (W + 2 - 3) // stride + 1
    WoC = Wo * Cout
    WoCp = pl.cdiv(WoC, 128) * 128                        # lane-dense output width

    # Pad H by stride+1 per side (backs the conv2 H-halo recompute, masked to
    # zero in-kernel) and W by 1 per side; flatten (W, Cin) into lanes.
    ph = stride + 1
    xpad = jnp.pad(x, ((0, 0), (ph, ph), (1, 1), (0, 0)))
    Hp, Wp = H + 2 * ph, W + 2
    WpC = Wp * Cin
    x_lanes = xpad.reshape(N, Hp, WpC).astype(compute_dtype)

    # Fold BN (inference) into per-channel scale/shift; scales go into weights.
    def fold(gamma, beta, mean, var):
        sc = (gamma / jnp.sqrt(var + eps)).astype(jnp.float32)
        return sc, (beta - mean * sc).astype(jnp.float32)

    sc1, sh1 = fold(*params["bn1"])
    sc2, sh2 = fold(*params["bn2"])
    scd, shd = fold(*params["bnd"])

    # PyTorch OIHW -> HWIO, then build block-banded GEMM weights.
    w1 = jnp.transpose(params["w1"], (2, 3, 1, 0)).astype(jnp.float32)  # (3,3,Ci,Co)
    w2 = jnp.transpose(params["w2"], (2, 3, 1, 0)).astype(jnp.float32)  # (3,3,Co,Co)
    wd = jnp.transpose(params["wd"], (2, 3, 1, 0)).astype(jnp.float32)  # (1,1,Ci,Co)

    rhs1 = jnp.stack([_make_banded(w1[kh], sc1, Wp, Wo, stride, 0)
                      for kh in range(3)])                # (3, WpC, WoC)
    rhs2 = jnp.stack([_make_banded(w2[kh], sc2, Wo, Wo, 1, -1)
                      for kh in range(3)])                # (3, WoC, WoC)
    rhsd = _make_banded(wd[0], scd, Wp, Wo, stride, 1)    # (WpC, WoC)
    shift1 = jnp.tile(sh1, (Wo,)).reshape(1, WoC)
    shift2 = jnp.tile(sh2 + sc2 * params["b2"].astype(jnp.float32) + shd,
                      (Wo,)).reshape(1, WoC)

    # Pad output lanes to a multiple of 128 (unmasked stores); pad lanes carry
    # zero weights / zero shifts and are sliced off afterwards.
    def pad_last(a, to):
        p = to - a.shape[-1]
        return a if p == 0 else jnp.pad(a, [(0, 0)] * (a.ndim - 1) + [(0, p)])

    rhs1 = pad_last(rhs1, WoCp).astype(compute_dtype)
    rhsd = pad_last(rhsd, WoCp).astype(compute_dtype)
    rhs2 = pad_last(rhs2, WoCp)
    if rhs2.shape[1] != WoCp:                             # pad y1-lane (K) dim too
        rhs2 = jnp.pad(rhs2, ((0, 0), (0, WoCp - rhs2.shape[1]), (0, 0)))
    rhs2 = rhs2.astype(compute_dtype)
    shift1 = pad_last(shift1, WoCp)
    shift2 = pad_last(shift2, WoCp)

    # Generation-aware VMEM limit (v7x has only 64 MiB physical).
    try:
        vmem_cap = pltpu.get_tpu_info().vmem_capacity_bytes
    except Exception:
        vmem_cap = 128 * 1024 * 1024
    vmem_limit = int(min(max(32 * 2**20, vmem_cap // 2), 96 * 2**20))

    itemsize = jnp.dtype(compute_dtype).itemsize
    w_bytes = (rhs1.size + rhs2.size + rhsd.size) * itemsize + 2 * WoCp * 4

    def step_bytes(t):
        # double-buffered image + weights + output band + f32 intermediates.
        return (2 * Hp * WpC * itemsize + 2 * w_bytes
                + 2 * t * WoCp * 4 + 8 * (t + 2) * WoCp * 4)

    # Largest output-row band (multiple of 8 or == Ho) that fits the budget.
    if tile_h is None:
        cands = sorted({Ho} | {t for t in range(8, Ho, 8) if Ho % t == 0},
                       reverse=True)
        tile_h = next((t for t in cands if step_bytes(t) <= vmem_limit // 2),
                      cands[-1])
    assert Ho % tile_h == 0 and (tile_h % 8 == 0 or tile_h == Ho), (Ho, tile_h)
    nbands = Ho // tile_h

    kernel = functools.partial(_residual_block_kernel, stride, tile_h, Ho)

    flops = (2 * N * nbands * 3 * (tile_h + 2) * WpC * WoCp      # conv1
             + 2 * N * Ho * (3 * WoCp + WpC) * WoCp              # conv2 + ds
             + 6 * N * Ho * WoCp)                                # shift/relu/mask
    bytes_accessed = (N * Hp * WpC * itemsize + N * Ho * WoCp * 4
                      + (rhs1.size + rhs2.size + rhsd.size) * itemsize
                      + 2 * WoCp * 4)

    out = pl.pallas_call(
        kernel,
        out_shape=jax.ShapeDtypeStruct((N, Ho, WoCp), jnp.float32),
        grid_spec=pltpu.PrefetchScalarGridSpec(
            num_scalar_prefetch=0,
            grid=(N, nbands),
            in_specs=[
                pl.BlockSpec((1, Hp, WpC), lambda n, r: (n, 0, 0)),
                pl.BlockSpec((3, WpC, WoCp), lambda n, r: (0, 0, 0)),
                pl.BlockSpec((3, WoCp, WoCp), lambda n, r: (0, 0, 0)),
                pl.BlockSpec((WpC, WoCp), lambda n, r: (0, 0)),
                pl.BlockSpec((1, WoCp), lambda n, r: (0, 0)),
                pl.BlockSpec((1, WoCp), lambda n, r: (0, 0)),
            ],
            out_specs=pl.BlockSpec((1, tile_h, WoCp), lambda n, r: (n, r, 0)),
        ),
        compiler_params=pltpu.CompilerParams(
            dimension_semantics=("parallel", "parallel"),
            vmem_limit_bytes=vmem_limit),
        cost_estimate=pl.CostEstimate(flops=int(flops), transcendentals=0,
                                      bytes_accessed=int(bytes_accessed)),
    )(x_lanes, rhs1, rhs2, rhsd, shift1, shift2)

    out = out[..., :WoC].reshape(N, Ho, Wo, Cout)
    return jnp.transpose(out, (0, 3, 1, 2))               # NHWC -> NCHW


def reference_forward(x, p, stride=1, eps=1e-5):
    """Pure-JAX NCHW reference (matches the PyTorch module in eval mode)."""
    def conv(x, w, s, pad):
        return lax.conv_general_dilated(
            x, w, (s, s), [(pad, pad), (pad, pad)],
            dimension_numbers=("NCHW", "OIHW", "NCHW"))

    def bn(x, g, b, m, v):
        return ((x - m[None, :, None, None])
                / jnp.sqrt(v[None, :, None, None] + eps)
                * g[None, :, None, None] + b[None, :, None, None])

    y = jax.nn.relu(bn(conv(x, p["w1"], stride, 1), *p["bn1"]))
    y = bn(conv(y, p["w2"], 1, 1) + p["b2"][None, :, None, None], *p["bn2"])
    r = bn(conv(x, p["wd"], stride, 0), *p["bnd"])
    return jax.nn.relu(y + r)


if __name__ == "__main__":
    N, Cin, Cout, H, W = 2, 4, 8, 16, 16
    stride = 1

    key = jax.random.PRNGKey(0)
    ks = jax.random.split(key, 16)

    def bn_params(k0, k1, k2, k3):
        return (1.0 + 0.1 * jax.random.normal(ks[k0], (Cout,), jnp.float32),
                0.1 * jax.random.normal(ks[k1], (Cout,), jnp.float32),
                0.1 * jax.random.normal(ks[k2], (Cout,), jnp.float32),
                1.0 + 0.1 * jnp.abs(jax.random.normal(ks[k3], (Cout,), jnp.float32)))

    params = {
        "w1": 0.2 * jax.random.normal(ks[0], (Cout, Cin, 3, 3), jnp.float32),
        "w2": 0.2 * jax.random.normal(ks[1], (Cout, Cout, 3, 3), jnp.float32),
        "b2": 0.1 * jax.random.normal(ks[2], (Cout,), jnp.float32),
        "wd": 0.2 * jax.random.normal(ks[3], (Cout, Cin, 1, 1), jnp.float32),
        "bn1": bn_params(4, 5, 6, 7),
        "bn2": bn_params(8, 9, 10, 11),
        "bnd": bn_params(12, 13, 14, 15),
    }

    x = jax.random.normal(jax.random.PRNGKey(1), (N, Cin, H, W), jnp.float32)
    ref = reference_forward(x, params, stride=stride)

    # f32 path (strict check).
    out = jax.block_until_ready(residual_block_forward(x, params, stride=stride))
    assert out.shape == (N, Cout, H, W), out.shape
    err_f32 = float(jnp.max(jnp.abs(out - ref)))
    assert jnp.allclose(out, ref, atol=1e-3, rtol=1e-3), err_f32

    # bf16 matmul-operand path (v6e/v7x MXU); accumulation / shifts stay f32.
    out_bf16 = jax.block_until_ready(
        residual_block_forward(x, params, stride=stride,
                               compute_dtype=jnp.bfloat16))
    err_bf16 = float(jnp.max(jnp.abs(out_bf16 - ref)))
    assert jnp.allclose(out_bf16, ref, atol=1e-1, rtol=1e-1), err_bf16

    print("KERNEL_OK")
</pallas_src>

<mosaic_0001>
module attributes {stable_mosaic.version = 11 : i64} {
  func.func @_residual_block_kernel(%arg0: i32, %arg1: i32, %arg2: memref<1x20x72xf32, #tpu.memory_space<vmem>>, %arg3: memref<3x72x128xf32, #tpu.memory_space<vmem>>, %arg4: memref<3x128x128xf32, #tpu.memory_space<vmem>>, %arg5: memref<72x128xf32, #tpu.memory_space<vmem>>, %arg6: memref<1x128xf32, #tpu.memory_space<vmem>>, %arg7: memref<1x128xf32, #tpu.memory_space<vmem>>, %arg8: memref<1x16x128xf32, #tpu.memory_space<vmem>>) attributes {dimension_semantics = [#tpu.dimension_semantics<parallel>, #tpu.dimension_semantics<parallel>], iteration_bounds = array<i64: 2, 1>, scalar_prefetch = 0 : i64, scratch_operands = 0 : i64, tpu.core_type = #tpu.core_type<tc>, window_params = [{transform_indices = @transform_0, window_bounds = array<i64: 1, 20, 72>}, {pipeline_mode = #tpu.pipeline_mode<synchronous>, transform_indices = @transform_1, window_bounds = array<i64: 3, 72, 128>}, {pipeline_mode = #tpu.pipeline_mode<synchronous>, transform_indices = @transform_2, window_bounds = array<i64: 3, 128, 128>}, {pipeline_mode = #tpu.pipeline_mode<synchronous>, transform_indices = @transform_3, window_bounds = array<i64: 72, 128>}, {pipeline_mode = #tpu.pipeline_mode<synchronous>, transform_indices = @transform_4, window_bounds = array<i64: 1, 128>}, {pipeline_mode = #tpu.pipeline_mode<synchronous>, transform_indices = @transform_5, window_bounds = array<i64: 1, 128>}, {transform_indices = @transform_6, window_bounds = array<i64: 1, 16, 128>}]} {
    %c16_i32 = arith.constant 16 : i32
    %0 = arith.muli %arg1, %c16_i32 : i32
    %c1_i32 = arith.constant 1 : i32
    %1 = arith.muli %c1_i32, %0 : i32
    %2 = tpu.assume_multiple %1, 8 : i32
    %c0 = arith.constant 0 : index
    %3 = arith.index_cast %2 : i32 to index
    %c0_0 = arith.constant 0 : index
    %4 = vector.load %arg2[%c0, %3, %c0_0] : memref<1x20x72xf32, #tpu.memory_space<vmem>>, vector<1x20x72xf32>
    %5 = vector.shape_cast %4 : vector<1x20x72xf32> to vector<20x72xf32>
    %6 = vector.extract_strided_slice %5 {offsets = [0, 0], sizes = [18, 72], strides = [1, 1]} : vector<20x72xf32> to vector<18x72xf32>
    %c0_1 = arith.constant 0 : index
    %c0_2 = arith.constant 0 : index
    %c0_3 = arith.constant 0 : index
    %7 = vector.load %arg3[%c0_1, %c0_2, %c0_3] : memref<3x72x128xf32, #tpu.memory_space<vmem>>, vector<1x72x128xf32>
    %8 = vector.shape_cast %7 : vector<1x72x128xf32> to vector<72x128xf32>
    %cst = arith.constant dense<0.000000e+00> : vector<18x128xf32>
    %9 = tpu.matmul %6, %8, %cst {dimension_numbers = #tpu.dot_dimension_numbers<[1], [0], [0], [1], [0, 0, 1, 1], [], []>} : vector<18x72xf32>, vector<72x128xf32>, vector<18x128xf32> -> vector<18x128xf32>
    %10 = vector.extract_strided_slice %5 {offsets = [1, 0], sizes = [18, 72], strides = [1, 1]} : vector<20x72xf32> to vector<18x72xf32>
    %c1 = arith.constant 1 : index
    %c0_4 = arith.constant 0 : index
    %c0_5 = arith.constant 0 : index
    %11 = vector.load %arg3[%c1, %c0_4, %c0_5] : memref<3x72x128xf32, #tpu.memory_space<vmem>>, vector<1x72x128xf32>
    %12 = vector.shape_cast %11 : vector<1x72x128xf32> to vector<72x128xf32>
    %cst_6 = arith.constant dense<0.000000e+00> : vector<18x128xf32>
    %13 = tpu.matmul %10, %12, %cst_6 {dimension_numbers = #tpu.dot_dimension_numbers<[1], [0], [0], [1], [0, 0, 1, 1], [], []>} : vector<18x72xf32>, vector<72x128xf32>, vector<18x128xf32> -> vector<18x128xf32>
    %14 = arith.addf %9, %13 : vector<18x128xf32>
    %15 = vector.extract_strided_slice %5 {offsets = [2, 0], sizes = [18, 72], strides = [1, 1]} : vector<20x72xf32> to vector<18x72xf32>
    %c2 = arith.constant 2 : index
    %c0_7 = arith.constant 0 : index
    %c0_8 = arith.constant 0 : index
    %16 = vector.load %arg3[%c2, %c0_7, %c0_8] : memref<3x72x128xf32, #tpu.memory_space<vmem>>, vector<1x72x128xf32>
    %17 = vector.shape_cast %16 : vector<1x72x128xf32> to vector<72x128xf32>
    %cst_9 = arith.constant dense<0.000000e+00> : vector<18x128xf32>
    %18 = tpu.matmul %15, %17, %cst_9 {dimension_numbers = #tpu.dot_dimension_numbers<[1], [0], [0], [1], [0, 0, 1, 1], [], []>} : vector<18x72xf32>, vector<72x128xf32>, vector<18x128xf32> -> vector<18x128xf32>
    %19 = arith.addf %14, %18 : vector<18x128xf32>
    %c0_10 = arith.constant 0 : index
    %c0_11 = arith.constant 0 : index
    %20 = vector.load %arg6[%c0_10, %c0_11] : memref<1x128xf32, #tpu.memory_space<vmem>>, vector<1x128xf32>
    %21 = vector.broadcast %20 : vector<1x128xf32> to vector<18x128xf32>
    %22 = arith.addf %19, %21 : vector<18x128xf32>
    %cst_12 = arith.constant 0.000000e+00 : f32
    %23 = vector.broadcast %cst_12 : f32 to vector<18x128xf32>
    %24 = arith.maximumf %22, %23 : vector<18x128xf32>
    %c1_i32_13 = arith.constant 1 : i32
    %25 = arith.subi %0, %c1_i32_13 : i32
    %26 = tpu.iota {dimensions = array<i32: 0>} : vector<18x1xi32>
    %27 = vector.broadcast %25 : i32 to vector<18x1xi32>
    %28 = arith.addi %27, %26 : vector<18x1xi32>
    %c0_i32 = arith.constant 0 : i32
    %29 = vector.broadcast %c0_i32 : i32 to vector<18x1xi32>
    %30 = arith.cmpi sge, %28, %29 : vector<18x1xi32>
    %c16_i32_14 = arith.constant 16 : i32
    %31 = vector.broadcast %c16_i32_14 : i32 to vector<18x1xi32>
    %32 = arith.cmpi slt, %28, %31 : vector<18x1xi32>
    %33 = arith.andi %30, %32 : vector<18x1xi1>
    %cst_15 = arith.constant 0.000000e+00 : f32
    %34 = vector.shape_cast %33 : vector<18x1xi1> to vector<18x1xi1>
    %35 = vector.broadcast %34 : vector<18x1xi1> to vector<18x128xi1>
    %36 = vector.broadcast %cst_15 : f32 to vector<18x128xf32>
    %37 = arith.select %35, %24, %36 : vector<18x128xi1>, vector<18x128xf32>
    %38 = vector.extract_strided_slice %5 {offsets = [2, 0], sizes = [16, 72], strides = [1, 1]} : vector<20x72xf32> to vector<16x72xf32>
    %c0_16 = arith.constant 0 : index
    %c0_17 = arith.constant 0 : index
    %39 = vector.load %arg5[%c0_16, %c0_17] : memref<72x128xf32, #tpu.memory_space<vmem>>, vector<72x128xf32>
    %cst_18 = arith.constant dense<0.000000e+00> : vector<16x128xf32>
    %40 = tpu.matmul %38, %39, %cst_18 {dimension_numbers = #tpu.dot_dimension_numbers<[1], [0], [0], [1], [0, 0, 1, 1], [], []>} : vector<16x72xf32>, vector<72x128xf32>, vector<16x128xf32> -> vector<16x128xf32>
    %41 = vector.extract_strided_slice %37 {offsets = [0, 0], sizes = [16, 128], strides = [1, 1]} : vector<18x128xf32> to vector<16x128xf32>
    %c0_19 = arith.constant 0 : index
    %c0_20 = arith.constant 0 : index
    %c0_21 = arith.constant 0 : index
    %42 = vector.load %arg4[%c0_19, %c0_20, %c0_21] : memref<3x128x128xf32, #tpu.memory_space<vmem>>, vector<1x128x128xf32>
    %43 = vector.shape_cast %42 : vector<1x128x128xf32> to vector<128x128xf32>
    %cst_22 = arith.constant dense<0.000000e+00> : vector<16x128xf32>
    %44 = tpu.matmul %41, %43, %cst_22 {dimension_numbers = #tpu.dot_dimension_numbers<[1], [0], [0], [1], [0, 0, 1, 1], [], []>} : vector<16x128xf32>, vector<128x128xf32>, vector<16x128xf32> -> vector<16x128xf32>
    %45 = arith.addf %40, %44 : vector<16x128xf32>
    %46 = vector.extract_strided_slice %37 {offsets = [1, 0], sizes = [16, 128], strides = [1, 1]} : vector<18x128xf32> to vector<16x128xf32>
    %c1_23 = arith.constant 1 : index
    %c0_24 = arith.constant 0 : index
    %c0_25 = arith.constant 0 : index
    %47 = vector.load %arg4[%c1_23, %c0_24, %c0_25] : memref<3x128x128xf32, #tpu.memory_space<vmem>>, vector<1x128x128xf32>
    %48 = vector.shape_cast %47 : vector<1x128x128xf32> to vector<128x128xf32>
    %cst_26 = arith.constant dense<0.000000e+00> : vector<16x128xf32>
    %49 = tpu.matmul %46, %48, %cst_26 {dimension_numbers = #tpu.dot_dimension_numbers<[1], [0], [0], [1], [0, 0, 1, 1], [], []>} : vector<16x128xf32>, vector<128x128xf32>, vector<16x128xf32> -> vector<16x128xf32>
    %50 = arith.addf %45, %49 : vector<16x128xf32>
    %51 = vector.extract_strided_slice %37 {offsets = [2, 0], sizes = [16, 128], strides = [1, 1]} : vector<18x128xf32> to vector<16x128xf32>
    %c2_27 = arith.constant 2 : index
    %c0_28 = arith.constant 0 : index
    %c0_29 = arith.constant 0 : index
    %52 = vector.load %arg4[%c2_27, %c0_28, %c0_29] : memref<3x128x128xf32, #tpu.memory_space<vmem>>, vector<1x128x128xf32>
    %53 = vector.shape_cast %52 : vector<1x128x128xf32> to vector<128x128xf32>
    %cst_30 = arith.constant dense<0.000000e+00> : vector<16x128xf32>
    %54 = tpu.matmul %51, %53, %cst_30 {dimension_numbers = #tpu.dot_dimension_numbers<[1], [0], [0], [1], [0, 0, 1, 1], [], []>} : vector<16x128xf32>, vector<128x128xf32>, vector<16x128xf32> -> vector<16x128xf32>
    %55 = arith.addf %50, %54 : vector<16x128xf32>
    %c0_31 = arith.constant 0 : index
    %c0_32 = arith.constant 0 : index
    %56 = vector.load %arg7[%c0_31, %c0_32] : memref<1x128xf32, #tpu.memory_space<vmem>>, vector<1x128xf32>
    %57 = vector.broadcast %56 : vector<1x128xf32> to vector<16x128xf32>
    %58 = arith.addf %55, %57 : vector<16x128xf32>
    %cst_33 = arith.constant 0.000000e+00 : f32
    %59 = vector.broadcast %cst_33 : f32 to vector<16x128xf32>
    %60 = arith.maximumf %58, %59 : vector<16x128xf32>
    %c0_34 = arith.constant 0 : index
    %c0_35 = arith.constant 0 : index
    %c0_36 = arith.constant 0 : index
    %61 = vector.load %arg8[%c0_34, %c0_35, %c0_36] : memref<1x16x128xf32, #tpu.memory_space<vmem>>, vector<1x16x128xf32>
    %62 = vector.shape_cast %61 : vector<1x16x128xf32> to vector<16x128xf32>
    %63 = vector.shape_cast %60 : vector<16x128xf32> to vector<1x16x128xf32>
    tpu.vector_store %arg8[%c0_34, %c0_35, %c0_36], %63 {strides = array<i32>} : memref<1x16x128xf32, #tpu.memory_space<vmem>>, vector<1x16x128xf32>,
    return
  }
  func.func @transform_0(%arg0: i32, %arg1: i32) -> (i32, i32, i32) {
    %c0_i32 = arith.constant 0 : i32
    %c0_i32_0 = arith.constant 0 : i32
    %c0_i32_1 = arith.constant 0 : i32
    return %arg0, %c0_i32, %c0_i32_0 : i32, i32, i32
  }
  func.func @transform_1(%arg0: i32, %arg1: i32) -> (i32, i32, i32) {
    %c0_i32 = arith.constant 0 : i32
    %c0_i32_0 = arith.constant 0 : i32
    %c0_i32_1 = arith.constant 0 : i32
    %c0_i32_2 = arith.constant 0 : i32
    return %c0_i32, %c0_i32_0, %c0_i32_1 : i32, i32, i32
  }
  func.func @transform_2(%arg0: i32, %arg1: i32) -> (i32, i32, i32) {
    %c0_i32 = arith.constant 0 : i32
    %c0_i32_0 = arith.constant 0 : i32
    %c0_i32_1 = arith.constant 0 : i32
    %c0_i32_2 = arith.constant 0 : i32
    return %c0_i32, %c0_i32_0, %c0_i32_1 : i32, i32, i32
  }
  func.func @transform_3(%arg0: i32, %arg1: i32) -> (i32, i32) {
    %c0_i32 = arith.constant 0 : i32
    %c0_i32_0 = arith.constant 0 : i32
    %c0_i32_1 = arith.constant 0 : i32
    return %c0_i32, %c0_i32_0 : i32, i32
  }
  func.func @transform_4(%arg0: i32, %arg1: i32) -> (i32, i32) {
    %c0_i32 = arith.constant 0 : i32
    %c0_i32_0 = arith.constant 0 : i32
    %c0_i32_1 = arith.constant 0 : i32
    return %c0_i32, %c0_i32_0 : i32, i32
  }
  func.func @transform_5(%arg0: i32, %arg1: i32) -> (i32, i32) {
    %c0_i32 = arith.constant 0 : i32
    %c0_i32_0 = arith.constant 0 : i32
    %c0_i32_1 = arith.constant 0 : i32
    return %c0_i32, %c0_i32_0 : i32, i32
  }
  func.func @transform_6(%arg0: i32, %arg1: i32) -> (i32, i32, i32) {
    %c0_i32 = arith.constant 0 : i32
    %c0_i32_0 = arith.constant 0 : i32
    return %arg0, %arg1, %c0_i32 : i32, i32, i32
  }
}

</mosaic_0001>

<llo_original>
// kernel: tpu_custom_call.1
$region0: #{tpu_custom_call.1}
  #allocation0 [shape = 'u32[]', space=smem, size = 0x4, offset = 0x4, fixed_abs, tag = 'smem constant byte address 0x4 - core index']
  #allocation1 [shape = 'u32[72,128]{1,0:T(1,128)}', space=vmem, size = 0x9000, scoped, tag = 'internal scratch']
  %s0 = inlined_call_operand.vmem [shape: f32[2,20,72], index: 0, kind: input, shape index: {}]
  %s1 = inlined_call_operand.hbm [shape: f32[3,72,128], index: 1, kind: input, shape index: {}]
  %s2 = inlined_call_operand.hbm [shape: f32[3,128,128], index: 2, kind: input, shape index: {}]
  %s3 = inlined_call_operand.vmem [shape: f32[72,128], index: 3, kind: input, shape index: {}]
  %s4 = inlined_call_operand.vmem [shape: f32[1,128], index: 4, kind: input, shape index: {}]
  %s5 = inlined_call_operand.vmem [shape: f32[1,128], index: 5, kind: input, shape index: {}]
  %s6 = inlined_call_operand.hbm [shape: f32[2,16,128], index: 6, kind: output, shape index: {}]
  %s7 = sld [smem:[#allocation0]]
  $region65: #{tpu_custom_call.1} parent=0
    _
  %s9 = ssub.s32 1, %s7
  %s10 = scalar_select 0, %s9, %s7
  $region1: #{tpu_custom_call.1} parent=0
    #allocation2 [shape = 'u8[110592]{0}', space=vmem, size = 0x1b000, scoped, tag = 'input window, operand 1, single buffered']
    #allocation3 [shape = 's32[2]{0}', space=sflag, size = 0x8, scoped, tag = 'scoped memory for tpu_custom_call.1']
    #allocation4 [shape = 's32[2]{0}', space=sflag, size = 0x8, scoped, tag = 'scoped memory for tpu_custom_call.1']
    #allocation5 [shape = 'u8[196608]{0}', space=vmem, size = 0x30000, scoped, tag = 'input window, operand 2, single buffered']
    #allocation6 [shape = 's32[1]{0}', space=sflag, size = 0x4, scoped, tag = 'scoped memory for tpu_custom_call.1']
    #allocation7 [shape = 'u8[16384]{0}', space=vmem, size = 0x4000, scoped, tag = 'output window, operand 0']
    %11 = vsyncpa [#allocation3], 0
    %12 = vsyncpa [#allocation6], 0
    %13 = vsyncpa [#allocation4], 0
    %s14 = scalar_lea.sflag [#allocation4], 1
    %15 = vsyncpa %s14, 0
    loop: start=0, step=1, limit=4
    $region2: #{tpu_custom_call.1} parent=1 // loop_pre_header
      _
    $region3: #{tpu_custom_call.1} parent=1 // loop_header
      %s17 = sphi 0, %s21
      %p18 = scmp.ge.s32.totalorder %s17, 4
      %s24 = sphi 0, %s36
      %s25 = sphi 0, %s32
      %s26 = sphi 0, %s24
      %s27 = sphi 0, %s25
      %s28 = sphi 0, %s26
      %s29 = sphi 0, %s27
      %s39 = sphi 0, %s41
      %s42 = sphi 0, %s39
      %s43 = sphi 0, %s42
      %s59 = sphi 0, %s43
      %s63 = sphi 0, %s63
      %s65 = sphi 0, %s63
      %s66 = sphi 0, %s65
      %s80 = sphi 0, %s66
      %s84 = sphi 0, %s84
      %s86 = sphi 0, %s84
      %s87 = sphi 0, %s86
      %s101 = sphi 0, %s87
      %s105 = sphi 0, %s105
      %s107 = sphi 0, %s105
      %s108 = sphi 0, %s107
      %s122 = sphi 0, %s108
      %s126 = sphi 0, %s126
      %s128 = sphi 0, %s126
      %s129 = sphi 0, %s128
      %s143 = sphi 0, %s129
      %s147 = sphi 0, %s147
      %s149 = sphi 0, %s147
      %s150 = sphi 0, %s149
      %s164 = sphi 0, %s150
      %s172 = sphi 0, %s174
      %s175 = sphi 0, %s172
      %s176 = sphi 0, %s175
      %s192 = sphi 0, %s176
    $region4: #{tpu_custom_call.1} parent=1 // loop_header_branch
      %20 = sbr.rel (%p18) target = $region8
    $region5: #{tpu_custom_call.1} parent=1 // loop_body
      %s22 = ssub.s32 %s17, 1
      %s23 = ssub.s32 %s17, 2
      %s30 = sadd.s32 1, %s25
      %p31 = scmp.ge.s32.totalorder %s30, 1
      %s32 = scalar_select %p31, 0, %s30
      %s33 = sadd.s32 1, %s24
      %s34 = scalar_select %p31, %s33, %s24
      %p35 = scmp.ge.s32.totalorder %s34, 2
      %s36 = scalar_select %p35, 0, %s34
      %s37 = ssub.s32 %s24, %s36
      %p38 = scmp.eq.s32.totalorder %s37, 0
      %s40 = sadd.s32 %s39, 1
      %s41 = scalar_select %p38, %s39, %s40
      %p44 = pneg %p38
      %p45 = scmp.eq.s32.totalorder %s17, 1
      %p46 = por %p44, %p45
      %p47 = scmp.ne.s32.totalorder %s39, %s42
      %p48 = scmp.eq.s32.totalorder %s17, 0
      %p49 = por %p47, %p48
      %p50 = scmp.ne.s32.totalorder %s39, %s42
      %p51 = scmp.eq.s32.totalorder %s22, 1
      %p52 = por %p50, %p51
      %p53 = scmp.ne.s32.totalorder %s42, %s43
      %p54 = scmp.eq.s32.totalorder %s22, 0
      %p55 = por %p53, %p54
      %p56 = scmp.ne.s32.totalorder %s42, %s43
      %p57 = scmp.eq.s32.totalorder %s23, 1
      %p58 = por %p56, %p57
      %p60 = scmp.ne.s32.totalorder %s43, %s59
      %p61 = scmp.eq.s32.totalorder %s23, 0
      %p62 = por %p60, %p61
      %s64 = sadd.s32 %s63, 1
      %p67 = scmp.eq.s32.totalorder %s17, 1
      %p68 = scmp.ne.s32.totalorder %s63, %s65
      %p69 = scmp.eq.s32.totalorder %s17, 0
      %p70 = por %p68, %p69
      %p71 = scmp.ne.s32.totalorder %s63, %s65
      %p72 = scmp.eq.s32.totalorder %s22, 1
      %p73 = por %p71, %p72
      %p74 = scmp.ne.s32.totalorder %s65, %s66
      %p75 = scmp.eq.s32.totalorder %s22, 0
      %p76 = por %p74, %p75
      %p77 = scmp.ne.s32.totalorder %s65, %s66
      %p78 = scmp.eq.s32.totalorder %s23, 1
      %p79 = por %p77, %p78
      %p81 = scmp.ne.s32.totalorder %s66, %s80
      %p82 = scmp.eq.s32.totalorder %s23, 0
      %p83 = por %p81, %p82
      %s85 = sadd.s32 %s84, 1
      %p88 = scmp.eq.s32.totalorder %s17, 1
      %p89 = scmp.ne.s32.totalorder %s84, %s86
      %p90 = scmp.eq.s32.totalorder %s17, 0
      %p91 = por %p89, %p90
      %p92 = scmp.ne.s32.totalorder %s84, %s86
      %p93 = scmp.eq.s32.totalorder %s22, 1
      %p94 = por %p92, %p93
      %p95 = scmp.ne.s32.totalorder %s86, %s87
      %p96 = scmp.eq.s32.totalorder %s22, 0
      %p97 = por %p95, %p96
      %p98 = scmp.ne.s32.totalorder %s86, %s87
      %p99 = scmp.eq.s32.totalorder %s23, 1
      %p100 = por %p98, %p99
      %p102 = scmp.ne.s32.totalorder %s87, %s101
      %p103 = scmp.eq.s32.totalorder %s23, 0
      %p104 = por %p102, %p103
      %s106 = sadd.s32 %s105, 1
      %p109 = scmp.eq.s32.totalorder %s17, 1
      %p110 = scmp.ne.s32.totalorder %s105, %s107
      %p111 = scmp.eq.s32.totalorder %s17, 0
      %p112 = por %p110, %p111
      %p113 = scmp.ne.s32.totalorder %s105, %s107
      %p114 = scmp.eq.s32.totalorder %s22, 1
      %p115 = por %p113, %p114
      %p116 = scmp.ne.s32.totalorder %s107, %s108
      %p117 = scmp.eq.s32.totalorder %s22, 0
      %p118 = por %p116, %p117
      %p119 = scmp.ne.s32.totalorder %s107, %s108
      %p120 = scmp.eq.s32.totalorder %s23, 1
      %p121 = por %p119, %p120
      %p123 = scmp.ne.s32.totalorder %s108, %s122
      %p124 = scmp.eq.s32.totalorder %s23, 0
      %p125 = por %p123, %p124
      %s127 = sadd.s32 %s126, 1
      %p130 = scmp.eq.s32.totalorder %s17, 1
      %p131 = scmp.ne.s32.totalorder %s126, %s128
      %p132 = scmp.eq.s32.totalorder %s17, 0
      %p133 = por %p131, %p132
      %p134 = scmp.ne.s32.totalorder %s126, %s128
      %p135 = scmp.eq.s32.totalorder %s22, 1
      %p136 = por %p134, %p135
      %p137 = scmp.ne.s32.totalorder %s128, %s129
      %p138 = scmp.eq.s32.totalorder %s22, 0
      %p139 = por %p137, %p138
      %p140 = scmp.ne.s32.totalorder %s128, %s129
      %p141 = scmp.eq.s32.totalorder %s23, 1
      %p142 = por %p140, %p141
      %p144 = scmp.ne.s32.totalorder %s129, %s143
      %p145 = scmp.eq.s32.totalorder %s23, 0
      %p146 = por %p144, %p145
      %s148 = sadd.s32 %s147, 1
      %p151 = scmp.eq.s32.totalorder %s17, 1
      %p152 = scmp.ne.s32.totalorder %s147, %s149
      %p153 = scmp.eq.s32.totalorder %s17, 0
      %p154 = por %p152, %p153
      %p155 = scmp.ne.s32.totalorder %s147, %s149
      %p156 = scmp.eq.s32.totalorder %s22, 1
      %p157 = por %p155, %p156
      %p158 = scmp.ne.s32.totalorder %s149, %s150
      %p159 = scmp.eq.s32.totalorder %s22, 0
      %p160 = por %p158, %p159
      %p161 = scmp.ne.s32.totalorder %s149, %s150
      %p162 = scmp.eq.s32.totalorder %s23, 1
      %p163 = por %p161, %p162
      %p165 = scmp.ne.s32.totalorder %s150, %s164
      %p166 = scmp.eq.s32.totalorder %s23, 0
      %p167 = por %p165, %p166
      %s168 = ssub.s32 %s24, %s36
      %s169 = ssub.s32 %s25, %s32
      %s170 = sor.u32 %s168, %s169
      %p171 = scmp.eq.s32.totalorder %s170, 0
      %s173 = sadd.s32 %s172, 1
      %s174 = scalar_select %p171, %s172, %s173
      %p177 = pneg %p171
      %p178 = scmp.eq.s32.totalorder %s17, 1
      %p179 = por %p177, %p178
      %p180 = scmp.ne.s32.totalorder %s172, %s175
      %p181 = scmp.eq.s32.totalorder %s17, 0
      %p182 = por %p180, %p181
      %p183 = scmp.ne.s32.totalorder %s172, %s175
      %p184 = scmp.eq.s32.totalorder %s22, 1
      %p185 = por %p183, %p184
      %p186 = scmp.ne.s32.totalorder %s175, %s176
      %p187 = scmp.eq.s32.totalorder %s22, 0
      %p188 = por %p186, %p187
      %p189 = scmp.ne.s32.totalorder %s175, %s176
      %p190 = scmp.eq.s32.totalorder %s23, 1
      %p191 = por %p189, %p190
      %p193 = scmp.ne.s32.totalorder %s176, %s192
      %p194 = scmp.eq.s32.totalorder %s23, 0
      %p195 = por %p193, %p194
      %p196 = scmp.le.s32.totalorder 1, %s17
      %p197 = scmp.lt.s32.totalorder %s17, 3
      %p198 = pnand %p196, %p197
      %p199 = pneg %p198
      // Predicated region
      $region9: #{tpu_custom_call.1} parent=5 // pred_check
        _
      $region10: #{tpu_custom_call.1} parent=5 // pred_check_branch
        %201 = sbr.rel (%p198) target = $region12
      $region11: #{tpu_custom_call.1} parent=5 // pred_region
        %s202 = ssub.s32 %s17, 1
        // Predicated region
        $region13: #{tpu_custom_call.1} parent=11 // pred_check
          %p203 = pneg %p76
        $region14: #{tpu_custom_call.1} parent=11 // pred_check_branch
          %205 = sbr.rel (%p203) target = $region16
        $region15: #{tpu_custom_call.1} parent=11 // pred_region
          %207 = vsyncadd [#allocation3], 0
          %s208 = sshll.u32 %s1, 4
          %s209 = int_to_ptr.hbm [resolvable:$true] %s208
          %s210 = sshll.u32 [#allocation2], 4
          %s211 = int_to_ptr.vmem [resolvable:$true] %s210
          %216 = dma.hbm_to_vmem [thread:$0]  %s209, 3456, %s211, [#allocation3], 128, 128, 8
        $region16: #{tpu_custom_call.1} parent=11 // pred_fallthru
          _
        // Predicated region
        $region17: #{tpu_custom_call.1} parent=11 // pred_check
          %p217 = pneg %p97
        $region18: #{tpu_custom_call.1} parent=11 // pred_check_branch
          %219 = sbr.rel (%p217) target = $region20
        $region19: #{tpu_custom_call.1} parent=11 // pred_region
          %221 = vsyncadd [#allocation6], 0
          %s222 = sshll.u32 %s2, 4
          %s223 = int_to_ptr.hbm [resolvable:$true] %s222
          %s224 = sshll.u32 [#allocation5], 4
          %s225 = int_to_ptr.vmem [resolvable:$true] %s224
          %230 = dma.hbm_to_vmem [thread:$0]  %s223, 6144, %s225, [#allocation6], 128, 128, 8
        $region20: #{tpu_custom_call.1} parent=11 // pred_fallthru
          _
        // Predicated region
        $region21: #{tpu_custom_call.1} parent=11 // pred_check
          %p231 = pneg %p118
        $region22: #{tpu_custom_call.1} parent=11 // pred_check_branch
          %233 = sbr.rel (%p231) target = $region24
        $region23: #{tpu_custom_call.1} parent=11 // pred_region
          _
        $region24: #{tpu_custom_call.1} parent=11 // pred_fallthru
          _
        // Predicated region
        $region25: #{tpu_custom_call.1} parent=11 // pred_check
          %p234 = pneg %p139
        $region26: #{tpu_custom_call.1} parent=11 // pred_check_branch
          %236 = sbr.rel (%p234) target = $region28
        $region27: #{tpu_custom_call.1} parent=11 // pred_region
          _
        $region28: #{tpu_custom_call.1} parent=11 // pred_fallthru
          _
        // Predicated region
        $region29: #{tpu_custom_call.1} parent=11 // pred_check
          %p237 = pneg %p160
        $region30: #{tpu_custom_call.1} parent=11 // pred_check_branch
          %239 = sbr.rel (%p237) target = $region32
        $region31: #{tpu_custom_call.1} parent=11 // pred_region
          _
        $region32: #{tpu_custom_call.1} parent=11 // pred_fallthru
          _
      $region12: #{tpu_custom_call.1} parent=5 // pred_fallthru
        _
      %p240 = scmp.lt.s32.totalorder %s17, 2
      // Predicated region
      $region33: #{tpu_custom_call.1} parent=5 // pred_check
        %p241 = pneg %p240
      $region34: #{tpu_custom_call.1} parent=5 // pred_check_branch
        %243 = sbr.rel (%p241) target = $region36
      $region35: #{tpu_custom_call.1} parent=5 // pred_region
        // Predicated region
        $region37: #{tpu_custom_call.1} parent=35 // pred_check
          %p244 = pneg %p49
        $region38: #{tpu_custom_call.1} parent=35 // pred_check_branch
          %246 = sbr.rel (%p244) target = $region40
        $region39: #{tpu_custom_call.1} parent=35 // pred_region
          %p247 = scmp.lt.s32.totalorder %s24, 1
          %s248 = scalar_select %p247, %s24, 1
          %s249 = smul.addr %s248, 3
          %s250 = smul.addr %s249, 8
          %s251 = scalar_lea.vmem %s0, %s250
        $region40: #{tpu_custom_call.1} parent=35 // pred_fallthru
          _
      $region36: #{tpu_custom_call.1} parent=5 // pred_fallthru
        _
      %p252 = scmp.le.s32.totalorder 1, %s17
      %p253 = scmp.lt.s32.totalorder %s17, 3
      %p254 = pnand %p252, %p253
      %p255 = pneg %p254
      // Predicated region
      $region41: #{tpu_custom_call.1} parent=5 // pred_check
        _
      $region42: #{tpu_custom_call.1} parent=5 // pred_check_branch
        %257 = sbr.rel (%p254) target = $region44
      $region43: #{tpu_custom_call.1} parent=5 // pred_region
        %s258 = ssub.s32 %s17, 1
        // Predicated region
        $region45: #{tpu_custom_call.1} parent=43 // pred_check
          %p259 = pneg %p76
        $region46: #{tpu_custom_call.1} parent=43 // pred_check_branch
          %261 = sbr.rel (%p259) target = $region48
        $region47: #{tpu_custom_call.1} parent=43 // pred_region
          %263 = dma.done [#allocation3], 3456
        $region48: #{tpu_custom_call.1} parent=43 // pred_fallthru
          _
        // Predicated region
        $region49: #{tpu_custom_call.1} parent=43 // pred_check
          %p264 = pneg %p97
        $region50: #{tpu_custom_call.1} parent=43 // pred_check_branch
          %266 = sbr.rel (%p264) target = $region52
        $region51: #{tpu_custom_call.1} parent=43 // pred_region
          %268 = dma.done [#allocation6], 6144
        $region52: #{tpu_custom_call.1} parent=43 // pred_fallthru
          _
        %p269 = scmp.lt.s32.totalorder %s26, 1
        %s270 = scalar_select %p269, %s26, 1
        %s271 = smul.addr %s270, 3
        %s272 = smul.addr %s271, 8
        %s273 = scalar_lea.vmem %s0, %s272
        %p274 = pneg %p55
        %p275 = pneg %p52
        %p276 = pneg %p76
        %p277 = pneg %p73
        %p278 = pneg %p97
        %p279 = pneg %p94
        %p280 = pneg %p118
        %p281 = pneg %p115
        %p282 = pneg %p139
        %p283 = pneg %p136
        %p284 = pneg %p160
        %p285 = pneg %p157
        %p286 = pneg %p188
        %p287 = pneg %p185
        %s288 = sand.u32 %s175, 1
        %s289 = scalar_lea.sflag [#allocation4], %s288
        %s290 = sand.u32 %s175, 1
        %s291 = smul.addr %s290, 16
        %s292 = scalar_lea.vmem [#allocation7], %s291
        %p293 = scmp.lt.s32.totalorder %s26, 1
        %s294 = scalar_select %p293, %s26, 1
        %s295 = smul.addr %s294, 3
        %s296 = smul.addr %s295, 8
        %s297 = scalar_lea.vmem %s0, %s296
        %s298 = smul.u32 2, %s27
        %s299 = smul.u32 %s27, 16
        %s300 = scalar_lea.vmem %s297, %s299
        %v301 = vld [vmem:[%s300] sm:$0xff]
        %v302 = vld [vmem:[%s300 + $0x8] sm:$0xff]
        %v303 = vld [vmem:[%s300 + $0x10] sm:$0xf]
        %v304 = vld [vmem:[#allocation2] sm:$0xff]
        %v305 = vld [vmem:[#allocation2 + $0x8] sm:$0xff]
        %v306 = vld [vmem:[#allocation2 + $0x10] sm:$0xff]
        %v307 = vld [vmem:[#allocation2 + $0x18] sm:$0xff]
        %v308 = vld [vmem:[#allocation2 + $0x20] sm:$0xff]
        %v309 = vld [vmem:[#allocation2 + $0x28] sm:$0xff]
        %v310 = vld [vmem:[#allocation2 + $0x30] sm:$0xff]
        %v311 = vld [vmem:[#allocation2 + $0x38] sm:$0xff]
        %v312 = vld [vmem:[#allocation2 + $0x40] sm:$0xff]
        %s313 = scalar_lea.vmem [#allocation2], 72
        %v314 = vld [vmem:[%s313] sm:$0xff]
        %v315 = vld [vmem:[%s313 + $0x8] sm:$0xff]
        %v316 = vld [vmem:[%s313 + $0x10] sm:$0xff]
        %v317 = vld [vmem:[%s313 + $0x18] sm:$0xff]
        %v318 = vld [vmem:[%s313 + $0x20] sm:$0xff]
        %v319 = vld [vmem:[%s313 + $0x28] sm:$0xff]
        %v320 = vld [vmem:[%s313 + $0x30] sm:$0xff]
        %v321 = vld [vmem:[%s313 + $0x38] sm:$0xff]
        %v322 = vld [vmem:[%s313 + $0x40] sm:$0xff]
        %vm326 = vcmask 1046528
        %v327 = vrot.slane %v301, 1
        %v328 = vrot.slane %v302, 1
        %v329 = vsel %vm326, %v327, %v328
        %v330 = vrot.slane %v303, 1
        %v331 = vsel %vm326, %v328, %v330
        %vm332 = vcmask 588800
        %v333 = vsel %vm332, %v329, 0
        %v335 = vsel %vm332, %v331, 0
        %v337 = vsel %vm332, %v330, 0
        %339 = vmatpush.msra.mxu0 0.0
        %340 = vmatpush.msra.mxu0 0.0
        %341 = vmatpush.msra.mxu0 0.0
        %342 = vmatpush.msra.mxu0 0.0
        %343 = vmatpush.msra.mxu0 0.0
        %344 = vmatpush.msra.mxu0 0.0
        %345 = vmatpush.msra.mxu0 0.0
        %346 = vmatpush.msra.mxu0 %v322
        %347 = vmatpush.msra.mxu0 %v321
        %348 = vmatpush.msra.mxu0 %v320
        %349 = vmatpush.msra.mxu0 %v319
        %350 = vmatpush.msra.mxu0 %v318
        %351 = vmatpush.msra.mxu0 %v317
        %352 = vmatpush.msra.mxu0 %v316
        %353 = vmatpush.msra.mxu0 %v315
        %354 = vmatpush.msra.mxu0 %v314
        %355 = vmatmul.f32.gmra.mxu0 %v333
        %v356 = vpop.f32.mrf.mxu0
        %v357 = vadd.f32 0.0, %v356
        %358 = vmatmul.f32.gmra.mxu0 %v335
        %v359 = vpop.f32.mrf.mxu0
        %v360 = vadd.f32 0.0, %v359
        %361 = vmatmul.f32.gmra.mxu0 %v337
        %v362 = vpop.f32.mrf.mxu0
        %v363 = vadd.f32 0.0, %v362
        %364 = vdwg.mxu0
        %v365 = vsel %vm332, %v301, 0
        %v367 = vsel %vm332, %v302, 0
        %v369 = vsel %vm332, %v303, 0
        %371 = vmatpush.msra.mxu0 0.0
        %372 = vmatpush.msra.mxu0 0.0
        %373 = vmatpush.msra.mxu0 0.0
        %374 = vmatpush.msra.mxu0 0.0
        %375 = vmatpush.msra.mxu0 0.0
        %376 = vmatpush.msra.mxu0 0.0
        %377 = vmatpush.msra.mxu0 0.0
        %378 = vmatpush.msra.mxu0 %v312
        %379 = vmatpush.msra.mxu0 %v311
        %380 = vmatpush.msra.mxu0 %v310
        %381 = vmatpush.msra.mxu0 %v309
        %382 = vmatpush.msra.mxu0 %v308
        %383 = vmatpush.msra.mxu0 %v307
        %384 = vmatpush.msra.mxu0 %v306
        %385 = vmatpush.msra.mxu0 %v305
        %386 = vmatpush.msra.mxu0 %v304
        %387 = vmatmul.f32.gmra.mxu0 %v365
        %v388 = vpop.f32.mrf.mxu0
        %v389 = vadd.f32 %v357, %v388
        %390 = vmatmul.f32.gmra.mxu0 %v367
        %v391 = vpop.f32.mrf.mxu0
        %v392 = vadd.f32 %v360, %v391
        %393 = vmatmul.f32.gmra.mxu0 %v369
        %v394 = vpop.f32.mrf.mxu0
        %v395 = vadd.f32 %v363, %v394
        %396 = vdwg.mxu0
        %s397 = scalar_lea.vmem [#allocation2], 144
        %v398 = vld [vmem:[%s397] sm:$0xff]
        %v399 = vld [vmem:[%s397 + $0x8] sm:$0xff]
        %v400 = vld [vmem:[%s397 + $0x10] sm:$0xff]
        %v401 = vld [vmem:[%s397 + $0x18] sm:$0xff]
        %v402 = vld [vmem:[%s397 + $0x20] sm:$0xff]
        %v403 = vld [vmem:[%s397 + $0x28] sm:$0xff]
        %v404 = vld [vmem:[%s397 + $0x30] sm:$0xff]
        %v405 = vld [vmem:[%s397 + $0x38] sm:$0xff]
        %v406 = vld [vmem:[%s397 + $0x40] sm:$0xff]
        %vm407 = vcmask 1045504
        %v408 = vrot.slane %v301, 2
        %v409 = vrot.slane %v302, 2
        %v410 = vsel %vm407, %v408, %v409
        %v411 = vrot.slane %v303, 2
        %v412 = vsel %vm407, %v409, %v411
        %v413 = vsel %vm332, %v410, 0
        %v415 = vsel %vm332, %v412, 0
        %v417 = vsel %vm332, %v411, 0
        %419 = vmatpush.msra.mxu0 0.0
        %420 = vmatpush.msra.mxu0 0.0
        %421 = vmatpush.msra.mxu0 0.0
        %422 = vmatpush.msra.mxu0 0.0
        %423 = vmatpush.msra.mxu0 0.0
        %424 = vmatpush.msra.mxu0 0.0
        %425 = vmatpush.msra.mxu0 0.0
        %426 = vmatpush.msra.mxu0 %v406
        %427 = vmatpush.msra.mxu0 %v405
        %428 = vmatpush.msra.mxu0 %v404
        %429 = vmatpush.msra.mxu0 %v403
        %430 = vmatpush.msra.mxu0 %v402
        %431 = vmatpush.msra.mxu0 %v401
        %432 = vmatpush.msra.mxu0 %v400
        %433 = vmatpush.msra.mxu0 %v399
        %434 = vmatpush.msra.mxu0 %v398
        %435 = vmatmul.f32.gmra.mxu0 %v413
        %v436 = vpop.f32.mrf.mxu0
        %v437 = vadd.f32 0.0, %v436
        %438 = vmatmul.f32.gmra.mxu0 %v415
        %v439 = vpop.f32.mrf.mxu0
        %v440 = vadd.f32 0.0, %v439
        %441 = vmatmul.f32.gmra.mxu0 %v417
        %v442 = vpop.f32.mrf.mxu0
        %v443 = vadd.f32 0.0, %v442
        %444 = vdwg.mxu0
        %v445 = vadd.f32 %v389, %v437
        %v446 = vadd.f32 %v392, %v440
        %v447 = vadd.f32 %v395, %v443
        %v448 = vld [vmem:[%s4] sm:$0x1]
        %v450 = vperm.slane %v448, 0
        %v452 = vadd.f32 %v445, %v450
        %v453 = vadd.f32 %v446, %v450
        %v454 = vadd.f32 %v447, %v450
        %v455 = vmax.f32 %v452, 0.0
        %v456 = vmax.f32 %v453, 0.0
        %v457 = vmax.f32 %v454, 0.0
        %s458 = ssub.s32 %s299, 1
        %v459 = vlaneseq
        %v460 = vshrl.u32 %v459, 7
        %v461 = vadd.s32 %v460, 8
        %v462 = vadd.s32 %v460, 16
        %v463 = vstv %s458
        %v464 = vadd.s32 %v463, %v460
        %v465 = vadd.s32 %v463, %v461
        %v466 = vadd.s32 %v463, %v462
        %vm467 = vcmp.ge.s32.totalorder %v464, 0
        %vm468 = vcmp.ge.s32.totalorder %v465, 0
        %vm469 = vcmp.ge.s32.totalorder %v466, 0
        %vm470 = vcmp.lt.s32.totalorder %v464, 16
        %vm471 = vcmp.lt.s32.totalorder %v465, 16
        %vm472 = vcmp.lt.s32.totalorder %v466, 16
        %vm473 = vmand %vm467, %vm470
        %vm474 = vmand %vm468, %vm471
        %vm475 = vmand %vm469, %vm472
        %v476 = vsel %vm473, 1, 0
        %v477 = vsel %vm474, 1, 0
        %v478 = vsel %vm475, 1, 0
        %vm479 = vcmp.eq.s32.totalorder %v476, 1
        %vm480 = vcmp.eq.s32.totalorder %v477, 1
        %vm481 = vcmp.eq.s32.totalorder %v478, 1
        %v482 = vsel %vm479, %v455, 0.0
        %v483 = vsel %vm480, %v456, 0.0
        %v484 = vsel %vm481, %v457, 0.0
        %v485 = vld [vmem:[%s3] sm:$0xff]
        %v486 = vld [vmem:[%s3 + $0x8] sm:$0xff]
        %v487 = vld [vmem:[%s3 + $0x10] sm:$0xff]
        %v488 = vld [vmem:[%s3 + $0x18] sm:$0xff]
        %v489 = vld [vmem:[%s3 + $0x20] sm:$0xff]
        %v490 = vld [vmem:[%s3 + $0x28] sm:$0xff]
        %v491 = vld [vmem:[%s3 + $0x30] sm:$0xff]
        %v492 = vld [vmem:[%s3 + $0x38] sm:$0xff]
        %v493 = vld [vmem:[%s3 + $0x40] sm:$0xff]
        %v494 = vld [vmem:[#allocation5] sm:$0xff]
        %v495 = vld [vmem:[#allocation5 + $0x8] sm:$0xff]
        %v496 = vld [vmem:[#allocation5 + $0x10] sm:$0xff]
        %v497 = vld [vmem:[#allocation5 + $0x18] sm:$0xff]
        %v498 = vld [vmem:[#allocation5 + $0x20] sm:$0xff]
        %v499 = vld [vmem:[#allocation5 + $0x28] sm:$0xff]
        %v500 = vld [vmem:[#allocation5 + $0x30] sm:$0xff]
        %v501 = vld [vmem:[#allocation5 + $0x38] sm:$0xff]
        %v502 = vld [vmem:[#allocation5 + $0x40] sm:$0xff]
        %v503 = vld [vmem:[#allocation5 + $0x48] sm:$0xff]
        %v504 = vld [vmem:[#allocation5 + $0x50] sm:$0xff]
        %v505 = vld [vmem:[#allocation5 + $0x58] sm:$0xff]
        %v506 = vld [vmem:[#allocation5 + $0x60] sm:$0xff]
        %v507 = vld [vmem:[#allocation5 + $0x68] sm:$0xff]
        %v508 = vld [vmem:[#allocation5 + $0x70] sm:$0xff]
        %v509 = vld [vmem:[#allocation5 + $0x78] sm:$0xff]
        %510 = vmatpush.msra.mxu0 %v509
        %511 = vmatpush.msra.mxu0 %v508
        %512 = vmatpush.msra.mxu0 %v507
        %513 = vmatpush.msra.mxu0 %v506
        %514 = vmatpush.msra.mxu0 %v505
        %515 = vmatpush.msra.mxu0 %v504
        %516 = vmatpush.msra.mxu0 %v503
        %517 = vmatpush.msra.mxu0 %v502
        %518 = vmatpush.msra.mxu0 %v501
        %519 = vmatpush.msra.mxu0 %v500
        %520 = vmatpush.msra.mxu0 %v499
        %521 = vmatpush.msra.mxu0 %v498
        %522 = vmatpush.msra.mxu0 %v497
        %523 = vmatpush.msra.mxu0 %v496
        %524 = vmatpush.msra.mxu0 %v495
        %525 = vmatpush.msra.mxu0 %v494
        %526 = vmatmul.f32.gmra.mxu0 %v482
        %v527 = vpop.f32.mrf.mxu0
        %v528 = vadd.f32 0.0, %v527
        %529 = vmatmul.f32.gmra.mxu0 %v483
        %v530 = vpop.f32.mrf.mxu0
        %v531 = vadd.f32 0.0, %v530
        %532 = vdwg.mxu0
        %533 = vmatpush.msra.mxu0 0.0
        %534 = vmatpush.msra.mxu0 0.0
        %535 = vmatpush.msra.mxu0 0.0
        %536 = vmatpush.msra.mxu0 0.0
        %537 = vmatpush.msra.mxu0 0.0
        %538 = vmatpush.msra.mxu0 0.0
        %539 = vmatpush.msra.mxu0 0.0
        %540 = vmatpush.msra.mxu0 %v493
        %541 = vmatpush.msra.mxu0 %v492
        %542 = vmatpush.msra.mxu0 %v491
        %543 = vmatpush.msra.mxu0 %v490
        %544 = vmatpush.msra.mxu0 %v489
        %545 = vmatpush.msra.mxu0 %v488
        %546 = vmatpush.msra.mxu0 %v487
        %547 = vmatpush.msra.mxu0 %v486
        %548 = vmatpush.msra.mxu0 %v485
        %549 = vmatmul.f32.gmra.mxu0 %v413
        %v550 = vpop.f32.mrf.mxu0
        %v551 = vadd.f32 %v528, %v550
        %552 = vmatmul.f32.gmra.mxu0 %v415
        %v553 = vpop.f32.mrf.mxu0
        %v554 = vadd.f32 %v531, %v553
        %555 = vdwg.mxu0
        %s556 = scalar_lea.vmem [#allocation5], 128
        %v557 = vld [vmem:[%s556] sm:$0xff]
        %v558 = vld [vmem:[%s556 + $0x8] sm:$0xff]
        %v559 = vld [vmem:[%s556 + $0x10] sm:$0xff]
        %v560 = vld [vmem:[%s556 + $0x18] sm:$0xff]
        %v561 = vld [vmem:[%s556 + $0x20] sm:$0xff]
        %v562 = vld [vmem:[%s556 + $0x28] sm:$0xff]
        %v563 = vld [vmem:[%s556 + $0x30] sm:$0xff]
        %v564 = vld [vmem:[%s556 + $0x38] sm:$0xff]
        %v565 = vld [vmem:[%s556 + $0x40] sm:$0xff]
        %v566 = vld [vmem:[%s556 + $0x48] sm:$0xff]
        %v567 = vld [vmem:[%s556 + $0x50] sm:$0xff]
        %v568 = vld [vmem:[%s556 + $0x58] sm:$0xff]
        %v569 = vld [vmem:[%s556 + $0x60] sm:$0xff]
        %v570 = vld [vmem:[%s556 + $0x68] sm:$0xff]
        %v571 = vld [vmem:[%s556 + $0x70] sm:$0xff]
        %v572 = vld [vmem:[%s556 + $0x78] sm:$0xff]
        %v576 = vrot.slane %v482, 1
        %v577 = vrot.slane %v483, 1
        %v578 = vsel %vm326, %v576, %v577
        %v579 = vrot.slane %v484, 1
        %v580 = vsel %vm326, %v577, %v579
        %583 = vmatpush.msra.mxu0 %v572
        %584 = vmatpush.msra.mxu0 %v571
        %585 = vmatpush.msra.mxu0 %v570
        %586 = vmatpush.msra.mxu0 %v569
        %587 = vmatpush.msra.mxu0 %v568
        %588 = vmatpush.msra.mxu0 %v567
        %589 = vmatpush.msra.mxu0 %v566
        %590 = vmatpush.msra.mxu0 %v565
        %591 = vmatpush.msra.mxu0 %v564
        %592 = vmatpush.msra.mxu0 %v563
        %593 = vmatpush.msra.mxu0 %v562
        %594 = vmatpush.msra.mxu0 %v561
        %595 = vmatpush.msra.mxu0 %v560
        %596 = vmatpush.msra.mxu0 %v559
        %597 = vmatpush.msra.mxu0 %v558
        %598 = vmatpush.msra.mxu0 %v557
        %599 = vmatmul.f32.gmra.mxu0 %v578
        %v600 = vpop.f32.mrf.mxu0
        %v601 = vadd.f32 0.0, %v600
        %602 = vmatmul.f32.gmra.mxu0 %v580
        %v603 = vpop.f32.mrf.mxu0
        %v604 = vadd.f32 0.0, %v603
        %605 = vdwg.mxu0
        %v606 = vadd.f32 %v551, %v601
        %v607 = vadd.f32 %v554, %v604
        %s608 = scalar_lea.vmem [#allocation5], 256
        %v609 = vld [vmem:[%s608] sm:$0xff]
        %v610 = vld [vmem:[%s608 + $0x8] sm:$0xff]
        %v611 = vld [vmem:[%s608 + $0x10] sm:$0xff]
        %v612 = vld [vmem:[%s608 + $0x18] sm:$0xff]
        %v613 = vld [vmem:[%s608 + $0x20] sm:$0xff]
        %v614 = vld [vmem:[%s608 + $0x28] sm:$0xff]
        %v615 = vld [vmem:[%s608 + $0x30] sm:$0xff]
        %v616 = vld [vmem:[%s608 + $0x38] sm:$0xff]
        %v617 = vld [vmem:[%s608 + $0x40] sm:$0xff]
        %v618 = vld [vmem:[%s608 + $0x48] sm:$0xff]
        %v619 = vld [vmem:[%s608 + $0x50] sm:$0xff]
        %v620 = vld [vmem:[%s608 + $0x58] sm:$0xff]
        %v621 = vld [vmem:[%s608 + $0x60] sm:$0xff]
        %v622 = vld [vmem:[%s608 + $0x68] sm:$0xff]
        %v623 = vld [vmem:[%s608 + $0x70] sm:$0xff]
        %v624 = vld [vmem:[%s608 + $0x78] sm:$0xff]
        %v625 = vrot.slane %v482, 2
        %v626 = vrot.slane %v483, 2
        %v627 = vsel %vm407, %v625, %v626
        %v628 = vrot.slane %v484, 2
        %v629 = vsel %vm407, %v626, %v628
        %632 = vmatpush.msra.mxu0 %v624
        %633 = vmatpush.msra.mxu0 %v623
        %634 = vmatpush.msra.mxu0 %v622
        %635 = vmatpush.msra.mxu0 %v621
        %636 = vmatpush.msra.mxu0 %v620
        %637 = vmatpush.msra.mxu0 %v619
        %638 = vmatpush.msra.mxu0 %v618
        %639 = vmatpush.msra.mxu0 %v617
        %640 = vmatpush.msra.mxu0 %v616
        %641 = vmatpush.msra.mxu0 %v615
        %642 = vmatpush.msra.mxu0 %v614
        %643 = vmatpush.msra.mxu0 %v613
        %644 = vmatpush.msra.mxu0 %v612
        %645 = vmatpush.msra.mxu0 %v611
        %646 = vmatpush.msra.mxu0 %v610
        %647 = vmatpush.msra.mxu0 %v609
        %648 = vmatmul.f32.gmra.mxu0 %v627
        %v649 = vpop.f32.mrf.mxu0
        %v650 = vadd.f32 0.0, %v649
        %651 = vmatmul.f32.gmra.mxu0 %v629
        %v652 = vpop.f32.mrf.mxu0
        %v653 = vadd.f32 0.0, %v652
        %654 = vdwg.mxu0
        %v655 = vadd.f32 %v606, %v650
        %v656 = vadd.f32 %v607, %v653
        %v657 = vld [vmem:[%s5] sm:$0x1]
        %v659 = vperm.slane %v657, 0
        %v661 = vadd.f32 %v655, %v659
        %v662 = vadd.f32 %v656, %v659
        %v663 = vmax.f32 %v661, 0.0
        %v664 = vmax.f32 %v662, 0.0
        %665 = vst [vmem:[%s292] sm:$0xff] %v663
        %666 = vst [vmem:[%s292 + $0x8] sm:$0xff] %v664
        %s667 = sand.u32 %s175, 1
        %s668 = scalar_lea.sflag [#allocation4], %s667
        %s669 = sand.u32 %s175, 1
        %s670 = smul.addr %s669, 16
        %s671 = scalar_lea.vmem [#allocation7], %s670
        // Predicated region
        $region53: #{tpu_custom_call.1} parent=43 // pred_check
          %p672 = pneg %p185
        $region54: #{tpu_custom_call.1} parent=43 // pred_check_branch
          %674 = sbr.rel (%p672) target = $region56
        $region55: #{tpu_custom_call.1} parent=43 // pred_region
          %s675 = smul.u32 2, %s27
          %677 = vsyncadd %s668, 0
          %s678 = smul.addr %s26, 2
          %s679 = sadd.s32 %s675, %s678
          %s680 = smul.addr %s679, 8
          %s681 = scalar_lea.hbm %s6, %s680
          %s682 = sshll.u32 %s671, 4
          %s683 = int_to_ptr.vmem [resolvable:$true] %s682
          %s684 = sshll.u32 %s681, 4
          %s685 = int_to_ptr.hbm [resolvable:$true] %s684
          %690 = dma.vmem_to_hbm [thread:$0]  %s683, 256, %s685, %s668, 128, 128, 8
        $region56: #{tpu_custom_call.1} parent=43 // pred_fallthru
          _
      $region44: #{tpu_custom_call.1} parent=5 // pred_fallthru
        _
      %p691 = scmp.le.s32.totalorder 2, %s17
      // Predicated region
      $region57: #{tpu_custom_call.1} parent=5 // pred_check
        %p692 = pneg %p691
      $region58: #{tpu_custom_call.1} parent=5 // pred_check_branch
        %694 = sbr.rel (%p692) target = $region60
      $region59: #{tpu_custom_call.1} parent=5 // pred_region
        %s695 = ssub.s32 %s17, 2
        // Predicated region
        $region61: #{tpu_custom_call.1} parent=59 // pred_check
          %p696 = pneg %p191
        $region62: #{tpu_custom_call.1} parent=59 // pred_check_branch
          %698 = sbr.rel (%p696) target = $region64
        $region63: #{tpu_custom_call.1} parent=59 // pred_region
          %s699 = sand.u32 %s176, 1
          %s700 = scalar_lea.sflag [#allocation4], %s699
          %s701 = sand.u32 %s176, 1
          %s702 = smul.addr %s701, 16
          %s703 = scalar_lea.vmem [#allocation7], %s702
          %705 = dma.done %s700, 256
        $region64: #{tpu_custom_call.1} parent=59 // pred_fallthru
          _
      $region60: #{tpu_custom_call.1} parent=5 // pred_fallthru
        _
    $region6: #{tpu_custom_call.1} parent=1 // loop_footer
      %s21 = sadd.s32 1, %s17
    $region7: #{tpu_custom_call.1} parent=1 // loop_footer_branch
      %16 = sbr.rel target = $region3
    $region8: #{tpu_custom_call.1} parent=1 // loop_exit
      _
    %706 = vsyncpa [#allocation3], 1
    %s707 = scalar_lea.sflag [#allocation3], 1
    %708 = vsyncpa %s707, 1
    %709 = vsyncpa [#allocation6], 1
    %710 = vsyncpa [#allocation4], 1
    %s711 = scalar_lea.sflag [#allocation4], 1
    %712 = vsyncpa %s711, 1

</llo_original>
